<compile_context>
chip_gen: v5e
topology: v5e:2x2
jax: 0.10.0
libtpu: 0.0.40
codegen_flags: <defaults>
</compile_context>

<pallas_src>
import math
import numpy as np
import jax
import jax.numpy as jnp
from jax import lax
from jax.experimental import pallas as pl
from jax.experimental.pallas import tpu as pltpu


def rkt_kernel(scal_ref, inp_ref, qe_ref, rel_ref, ts_ref,
               w_in_ref, b_in_ref, wq_ref, bq_ref, wk_ref, bk_ref,
               wvo_ref, out_ref, attn_ref):
    nb, S, E = qe_ref.shape
    c_rel = scal_ref[0]       # l1
    c_time = scal_ref[1]      # (1 - l1) * l2
    c_prob = scal_ref[2]      # (1 - l1) * (1 - l2)
    b_out = scal_ref[3]
    bvo = scal_ref[4]

    # ---- projections: flatten (nb, S, *) -> (nb*S, *) so MXU M-dim = nb*S ----
    # (reshape is a free layout no-op when S is a multiple of the sublane pack)
    inp2 = inp_ref[...].reshape(nb * S, 2 * E)                    # bf16
    x = jnp.dot(inp2, w_in_ref[...], preferred_element_type=jnp.float32)
    x = jnp.maximum(x + b_in_ref[...], 0.0)                       # (nb*S, E) f32

    q = jnp.dot(qe_ref[...].reshape(nb * S, E), wq_ref[...],
                preferred_element_type=jnp.float32) + bq_ref[...]  # pre-scaled
    k = jnp.dot(x.astype(jnp.bfloat16), wk_ref[...],
                preferred_element_type=jnp.float32) + bk_ref[...]

    # ---- folded V @ lin_out:  vp = x @ (wv @ w_out) + bv @ w_out  ----
    x3 = x.reshape(nb, S, E)
    vp = jnp.sum(x3 * wvo_ref[...], axis=-1) + bvo                # (nb, S)

    # reshape while still f32 (sublane pack 8), then cast for the MXU
    q3 = q.reshape(nb, S, E).astype(jnp.bfloat16)
    k3 = k.reshape(nb, S, E).astype(jnp.bfloat16)

    # in-kernel causal ("future") mask via iota: masked where col > row
    row = lax.broadcasted_iota(jnp.int32, (S, S), 0)
    col = lax.broadcasted_iota(jnp.int32, (S, S), 1)
    fut = (col > row)[None]                                       # (1, S, S)

    # ---- rel branch: rel kept at FUTURE positions only; zeros -> -10000 ----
    rel = rel_ref[...].astype(jnp.float32)
    rel_logit = jnp.where(jnp.logical_and(fut, rel != 0.0), rel,
                          jnp.float32(-10000.0))
    m_rel = jnp.max(rel_logit, axis=-1, keepdims=True)
    e_rel = jnp.exp(rel_logit - m_rel)
    s_rel = jnp.sum(e_rel, axis=-1, keepdims=True)
    acc = e_rel * (c_rel * pl.reciprocal(s_rel, approx=True))

    # ---- time branch: softmax(exp(-|t|)) with future masked to -inf.
    # Logits are <= 1, so skip the max subtraction (no overflow possible);
    # masked entries contribute exp(-inf) = 0 exactly.
    ts_inner = jnp.exp(-jnp.abs(ts_ref[...].astype(jnp.float32)))
    e_ts = jnp.where(fut, 0.0, jnp.exp(ts_inner))
    s_ts = jnp.sum(e_ts, axis=-1, keepdims=True)
    acc = acc + e_ts * (c_time * pl.reciprocal(s_ts, approx=True))

    # ---- score branch (1/sqrt(E) already folded into wq/bq) ----
    scores = jnp.einsum('bqd,bkd->bqk', q3, k3,
                        preferred_element_type=jnp.float32)
    scores = jnp.where(fut, jnp.float32(-1e9), scores)
    m_sc = jnp.max(scores, axis=-1, keepdims=True)
    e_sc = jnp.exp(scores - m_sc)
    s_sc = jnp.sum(e_sc, axis=-1, keepdims=True)
    acc = acc + e_sc * (c_prob * pl.reciprocal(s_sc, approx=True))

    attn_ref[...] = acc                                           # f32 store

    # y = prob @ vp + b_out   (lane-axis reduce instead of (S,S)@(S,E) matmul)
    y = jnp.sum(acc * vp[:, None, :], axis=-1) + b_out            # (nb, S)
    out_ref[...] = y.reshape(1, 1, nb * S)                        # lane-dense


def _vmem_capacity_bytes():
    try:
        info = pltpu.get_tpu_info()
        for attr in ("vmem_capacity_bytes", "vmem_size_bytes", "vmem_bytes"):
            v = getattr(info, attr, None)
            if v:
                return int(v)
    except Exception:
        pass
    return 64 * 1024 * 1024            # conservative (v7x-sized) fallback


def _vmem_limit_bytes(capacity):
    # v7x (64 MiB physical): ~56 MiB; v5e/v6e (128 MiB physical): ~96 MiB.
    if capacity <= 64 * 1024 * 1024:
        return max(32 * 1024 * 1024, capacity - 8 * 1024 * 1024)
    return min(capacity - 32 * 1024 * 1024, 100 * 1024 * 1024)


def _pick_nb(B, S, E, budget_bytes):
    """How many sequences to process per grid step (must divide B)."""
    io_dbl = 2 * (S * 2 * E * 2        # lin_in inputs   bf16, double-buffered
                  + S * E * 2          # query embedding bf16
                  + 2 * S * S * 2)     # rel + timestamp bf16
    out_dbl = 2 * (S * S * 4 + S * 4)  # attention map f32 + scalar out f32
    interm = (3 * S * E * 4            # x, q, k (f32)
              + 2 * S * E * 2          # q3, k3 (bf16)
              + 5 * S * S * 4)         # ~live (S,S) f32 softmax temporaries
    per_seq = io_dbl + out_dbl + interm
    nb = max(1, int(budget_bytes // per_seq))
    if B >= 4:
        nb = min(nb, B // 4)           # >= 4 grid steps -> >= 2 per v7x core
    elif B >= 2:
        nb = min(nb, B // 2)
    nb = int(max(1, min(nb, B)))
    while B % nb:
        nb -= 1
    return nb


def rkt_forward(params, q_ids, r, nxt_ids, rel, timestamp):
    emb = params["item_embeds"]
    E = emb.shape[-1]
    B, S = q_ids.shape
    bf16 = jnp.bfloat16

    capacity = _vmem_capacity_bytes()
    vmem_limit = _vmem_limit_bytes(capacity)
    weight_dbl = 2 * (4 * E * E * 2 + 5 * E * 4)      # bf16 weights + f32 biases/wvo
    budget = max(1 << 20, int(0.85 * (vmem_limit - weight_dbl - (2 << 20))))
    nb = _pick_nb(B, S, E, budget)
    nsteps = B // nb

    # --- glue in plain JAX: embedding gathers, concatenation, param folding ---
    # TODO(synk): pad S to a multiple of 16 upstream so the in-kernel
    #             (nb,S,*) <-> (nb*S,*) reshapes are relayout-free for bf16.
    q_emb = emb[q_ids]                                            # (B, S, E)
    r_f = r[..., None].astype(jnp.float32)
    inputs = jnp.concatenate([q_emb * r_f, q_emb * (1.0 - r_f)], axis=-1)
    query_emb = emb[nxt_ids]                                      # (B, S, E)

    # fold lin_v @ lin_out and the 1/sqrt(E) score scale into the weights
    scale = jnp.float32(1.0 / math.sqrt(E))
    wq_s = (params["wq"] * scale).astype(bf16)
    bq_s = (params["bq"] * scale).astype(jnp.float32)
    wvo = (params["wv"] @ params["w_out"]).T.astype(jnp.float32)  # (1, E)
    bvo = (params["bv"] @ params["w_out"])[0, 0]

    l1 = jnp.float32(params["l1"])
    l2 = jnp.float32(params["l2"])
    scal = jnp.stack([l1,                          # c_rel
                      (1.0 - l1) * l2,             # c_time
                      (1.0 - l1) * (1.0 - l2),     # c_prob
                      jnp.float32(params["b_out"][0, 0]),
                      jnp.float32(bvo)]).astype(jnp.float32)

    full = lambda shape: pl.BlockSpec(shape, lambda i, _s=shape: (0,) * len(_s))
    per_b3 = lambda shape: pl.BlockSpec(shape, lambda i: (i, 0, 0))

    out_shapes = (
        jax.ShapeDtypeStruct((nsteps, 1, nb * S), jnp.float32),   # lin_out(outputs)
        jax.ShapeDtypeStruct((B, S, S), jnp.float32),             # prob_attn (H = 1)
    )

    grid_spec = pltpu.PrefetchScalarGridSpec(
        num_scalar_prefetch=0,
        grid=(nsteps,),
        in_specs=[
            pl.BlockSpec(memory_space=pltpu.MemorySpace.SMEM),    # blend coeffs + biases
            per_b3((nb, S, 2 * E)),                               # lin_in inputs (bf16)
            per_b3((nb, S, E)),                                   # query embeddings (bf16)
            per_b3((nb, S, S)),                                   # rel (bf16)
            per_b3((nb, S, S)),                                   # timestamp (bf16)
            full((2 * E, E)), full((1, E)),                       # lin_in W (bf16), b
            full((E, E)), full((1, E)),                           # Wq*scale (bf16), bq*scale
            full((E, E)), full((1, E)),                           # Wk (bf16), bk
            full((1, E)),                                         # (wv @ w_out)^T
        ],
        out_specs=[
            pl.BlockSpec((1, 1, nb * S), lambda i: (i, 0, 0)),
            pl.BlockSpec((nb, S, S), lambda i: (i, 0, 0)),
        ],
    )

    fn = pl.pallas_call(
        rkt_kernel,
        out_shape=out_shapes,
        grid_spec=grid_spec,
        compiler_params=pltpu.CompilerParams(
            dimension_semantics=("parallel",),
            vmem_limit_bytes=int(vmem_limit),
        ),
    )
    out, attn = fn(scal,
                   inputs.astype(bf16), query_emb.astype(bf16),
                   rel.astype(bf16), timestamp.astype(bf16),
                   params["w_in"].astype(bf16), params["b_in"].astype(jnp.float32),
                   wq_s, bq_s,
                   params["wk"].astype(bf16), params["bk"].astype(jnp.float32),
                   wvo)
    out = out.reshape(B, S)[..., None]                            # (B, S, 1)
    attn = attn[:, None]                                          # (B, 1, S, S) f32
    return out, attn


def rkt_reference(params, q_ids, r, nxt_ids, rel, timestamp):
    """Pure-JAX reference mirroring the PyTorch forward (eval mode)."""
    emb = params["item_embeds"]
    E = emb.shape[-1]
    S = q_ids.shape[1]
    q_emb = emb[q_ids]
    r_f = r[..., None].astype(jnp.float32)
    inputs = jnp.concatenate([q_emb * r_f, q_emb * (1.0 - r_f)], axis=-1)
    x = jax.nn.relu(inputs @ params["w_in"] + params["b_in"])
    query = emb[nxt_ids] @ params["wq"] + params["bq"]
    k = x @ params["wk"] + params["bk"]
    v = x @ params["wv"] + params["bv"]
    mask = jnp.triu(jnp.ones((S, S), jnp.float32), k=1)
    relm = rel * mask
    rel_attn = jax.nn.softmax(jnp.where(relm == 0.0, -10000.0, relm), axis=-1)
    scores = query @ jnp.swapaxes(k, -1, -2) / math.sqrt(E)
    scores = jnp.where(mask > 0.0, -1e9, scores)
    ts = jnp.exp(-jnp.abs(timestamp))
    ts = jnp.where(mask > 0.0, -jnp.inf, ts)
    prob = jax.nn.softmax(scores, axis=-1)
    time_attn = jax.nn.softmax(ts, axis=-1)
    prob = (1.0 - params["l2"]) * prob + params["l2"] * time_attn
    prob = (1.0 - params["l1"]) * prob + params["l1"] * rel_attn
    o = prob @ v
    y = o @ params["w_out"] + params["b_out"][0]
    return y, prob[:, None]


def init_params(key, num_items, embed_size):
    E = embed_size
    ks = jax.random.split(key, 11)

    def u(k, shape, scale):
        return jax.random.uniform(k, shape, jnp.float32, -scale, scale)

    emb = 0.1 * jax.random.normal(ks[0], (num_items + 1, E), jnp.float32)
    emb = emb.at[0].set(0.0)           # padding_idx = 0
    s_in = 1.0 / math.sqrt(2 * E)
    s = 1.0 / math.sqrt(E)
    return dict(
        item_embeds=emb,
        w_in=u(ks[1], (2 * E, E), s_in), b_in=u(ks[2], (1, E), s_in),
        wq=u(ks[3], (E, E), s), bq=u(ks[4], (1, E), s),
        wk=u(ks[5], (E, E), s), bk=u(ks[6], (1, E), s),
        wv=u(ks[7], (E, E), s), bv=u(ks[8], (1, E), s),
        w_out=u(ks[9], (E, 1), s), b_out=u(ks[10], (1, 1), s),
        l1=0.35, l2=0.55,               # deterministic stand-ins for torch.rand(1)
    )


if __name__ == "__main__":
    B, S, E, num_items = 2, 8, 32, 20
    key = jax.random.PRNGKey(0)
    kp, kq, kr, kn, krel, kt = jax.random.split(key, 6)

    params = init_params(kp, num_items, E)
    q_ids = jax.random.randint(kq, (B, S), 1, num_items + 1)
    r = jax.random.randint(kr, (B, S), 0, 2).astype(jnp.float32)
    nxt_ids = jax.random.randint(kn, (B, S), 1, num_items + 1)
    rel = jax.random.uniform(krel, (B, S, S), jnp.float32)
    timestamp = jax.random.uniform(kt, (B, S, S), jnp.float32, 0.0, 5.0)

    out, attn = rkt_forward(params, q_ids, r, nxt_ids, rel, timestamp)
    jax.block_until_ready((out, attn))

    ref_out, ref_attn = rkt_reference(params, q_ids, r, nxt_ids, rel, timestamp)
    assert np.allclose(np.asarray(out), np.asarray(ref_out), atol=1e-2, rtol=1e-2)
    assert np.allclose(np.asarray(attn), np.asarray(ref_attn), atol=1e-2, rtol=1e-2)

    print("KERNEL_OK")
</pallas_src>

<mosaic_0001>
module attributes {stable_mosaic.version = 11 : i64} {
  func.func @rkt_kernel(%arg0: i32, %arg1: memref<5xf32, #tpu.memory_space<smem>>, %arg2: memref<1x8x64xbf16, #tpu.memory_space<vmem>>, %arg3: memref<1x8x32xbf16, #tpu.memory_space<vmem>>, %arg4: memref<1x8x8xbf16, #tpu.memory_space<vmem>>, %arg5: memref<1x8x8xbf16, #tpu.memory_space<vmem>>, %arg6: memref<64x32xbf16, #tpu.memory_space<vmem>>, %arg7: memref<1x32xf32, #tpu.memory_space<vmem>>, %arg8: memref<32x32xbf16, #tpu.memory_space<vmem>>, %arg9: memref<1x32xf32, #tpu.memory_space<vmem>>, %arg10: memref<32x32xbf16, #tpu.memory_space<vmem>>, %arg11: memref<1x32xf32, #tpu.memory_space<vmem>>, %arg12: memref<1x32xf32, #tpu.memory_space<vmem>>, %arg13: memref<1x1x8xf32, #tpu.memory_space<vmem>>, %arg14: memref<1x8x8xf32, #tpu.memory_space<vmem>>) attributes {dimension_semantics = [#tpu.dimension_semantics<parallel>], iteration_bounds = array<i64: 2>, scalar_prefetch = 0 : i64, scratch_operands = 0 : i64, tpu.core_type = #tpu.core_type<tc>, window_params = [{transform_indices = @transform_0, window_bounds = array<i64: 5>}, {transform_indices = @transform_1, window_bounds = array<i64: 1, 8, 64>}, {transform_indices = @transform_2, window_bounds = array<i64: 1, 8, 32>}, {transform_indices = @transform_3, window_bounds = array<i64: 1, 8, 8>}, {transform_indices = @transform_4, window_bounds = array<i64: 1, 8, 8>}, {pipeline_mode = #tpu.pipeline_mode<synchronous>, transform_indices = @transform_5, window_bounds = array<i64: 64, 32>}, {pipeline_mode = #tpu.pipeline_mode<synchronous>, transform_indices = @transform_6, window_bounds = array<i64: 1, 32>}, {pipeline_mode = #tpu.pipeline_mode<synchronous>, transform_indices = @transform_7, window_bounds = array<i64: 32, 32>}, {pipeline_mode = #tpu.pipeline_mode<synchronous>, transform_indices = @transform_8, window_bounds = array<i64: 1, 32>}, {pipeline_mode = #tpu.pipeline_mode<synchronous>, transform_indices = @transform_9, window_bounds = array<i64: 32, 32>}, {pipeline_mode = #tpu.pipeline_mode<synchronous>, transform_indices = @transform_10, window_bounds = array<i64: 1, 32>}, {pipeline_mode = #tpu.pipeline_mode<synchronous>, transform_indices = @transform_11, window_bounds = array<i64: 1, 32>}, {transform_indices = @transform_12, window_bounds = array<i64: 1, 1, 8>}, {transform_indices = @transform_13, window_bounds = array<i64: 1, 8, 8>}]} {
    %c0 = arith.constant 0 : index
    %0 = memref.load %arg1[%c0] : memref<5xf32, #tpu.memory_space<smem>>
    %c1 = arith.constant 1 : index
    %1 = memref.load %arg1[%c1] : memref<5xf32, #tpu.memory_space<smem>>
    %c2 = arith.constant 2 : index
    %2 = memref.load %arg1[%c2] : memref<5xf32, #tpu.memory_space<smem>>
    %c3 = arith.constant 3 : index
    %3 = memref.load %arg1[%c3] : memref<5xf32, #tpu.memory_space<smem>>
    %c4 = arith.constant 4 : index
    %4 = memref.load %arg1[%c4] : memref<5xf32, #tpu.memory_space<smem>>
    %c0_0 = arith.constant 0 : index
    %c0_1 = arith.constant 0 : index
    %c0_2 = arith.constant 0 : index
    %5 = vector.load %arg2[%c0_0, %c0_1, %c0_2] : memref<1x8x64xbf16, #tpu.memory_space<vmem>>, vector<1x8x64xbf16>
    %6 = vector.shape_cast %5 : vector<1x8x64xbf16> to vector<8x64xbf16>
    %c0_3 = arith.constant 0 : index
    %c0_4 = arith.constant 0 : index
    %7 = vector.load %arg6[%c0_3, %c0_4] : memref<64x32xbf16, #tpu.memory_space<vmem>>, vector<64x32xbf16>
    %cst = arith.constant dense<0.000000e+00> : vector<8x32xf32>
    %8 = tpu.matmul %6, %7, %cst {dimension_numbers = #tpu.dot_dimension_numbers<[1], [0], [0], [1], [0, 0, 1, 1], [], []>} : vector<8x64xbf16>, vector<64x32xbf16>, vector<8x32xf32> -> vector<8x32xf32>
    %c0_5 = arith.constant 0 : index
    %c0_6 = arith.constant 0 : index
    %9 = vector.load %arg7[%c0_5, %c0_6] : memref<1x32xf32, #tpu.memory_space<vmem>>, vector<1x32xf32>
    %10 = vector.broadcast %9 : vector<1x32xf32> to vector<8x32xf32>
    %11 = arith.addf %8, %10 : vector<8x32xf32>
    %cst_7 = arith.constant 0.000000e+00 : f32
    %12 = vector.broadcast %cst_7 : f32 to vector<8x32xf32>
    %13 = arith.maximumf %11, %12 : vector<8x32xf32>
    %c0_8 = arith.constant 0 : index
    %c0_9 = arith.constant 0 : index
    %c0_10 = arith.constant 0 : index
    %14 = vector.load %arg3[%c0_8, %c0_9, %c0_10] : memref<1x8x32xbf16, #tpu.memory_space<vmem>>, vector<1x8x32xbf16>
    %15 = vector.shape_cast %14 : vector<1x8x32xbf16> to vector<8x32xbf16>
    %c0_11 = arith.constant 0 : index
    %c0_12 = arith.constant 0 : index
    %16 = vector.load %arg8[%c0_11, %c0_12] : memref<32x32xbf16, #tpu.memory_space<vmem>>, vector<32x32xbf16>
    %cst_13 = arith.constant dense<0.000000e+00> : vector<8x32xf32>
    %17 = tpu.matmul %15, %16, %cst_13 {dimension_numbers = #tpu.dot_dimension_numbers<[1], [0], [0], [1], [0, 0, 1, 1], [], []>} : vector<8x32xbf16>, vector<32x32xbf16>, vector<8x32xf32> -> vector<8x32xf32>
    %c0_14 = arith.constant 0 : index
    %c0_15 = arith.constant 0 : index
    %18 = vector.load %arg9[%c0_14, %c0_15] : memref<1x32xf32, #tpu.memory_space<vmem>>, vector<1x32xf32>
    %19 = vector.broadcast %18 : vector<1x32xf32> to vector<8x32xf32>
    %20 = arith.addf %17, %19 : vector<8x32xf32>
    %21 = arith.truncf %13 : vector<8x32xf32> to vector<8x32xbf16>
    %c0_16 = arith.constant 0 : index
    %c0_17 = arith.constant 0 : index
    %22 = vector.load %arg10[%c0_16, %c0_17] : memref<32x32xbf16, #tpu.memory_space<vmem>>, vector<32x32xbf16>
    %cst_18 = arith.constant dense<0.000000e+00> : vector<8x32xf32>
    %23 = tpu.matmul %21, %22, %cst_18 {dimension_numbers = #tpu.dot_dimension_numbers<[1], [0], [0], [1], [0, 0, 1, 1], [], []>} : vector<8x32xbf16>, vector<32x32xbf16>, vector<8x32xf32> -> vector<8x32xf32>
    %c0_19 = arith.constant 0 : index
    %c0_20 = arith.constant 0 : index
    %24 = vector.load %arg11[%c0_19, %c0_20] : memref<1x32xf32, #tpu.memory_space<vmem>>, vector<1x32xf32>
    %25 = vector.broadcast %24 : vector<1x32xf32> to vector<8x32xf32>
    %26 = arith.addf %23, %25 : vector<8x32xf32>
    %27 = vector.shape_cast %13 : vector<8x32xf32> to vector<1x8x32xf32>
    %c0_21 = arith.constant 0 : index
    %c0_22 = arith.constant 0 : index
    %28 = vector.load %arg12[%c0_21, %c0_22] : memref<1x32xf32, #tpu.memory_space<vmem>>, vector<1x32xf32>
    %29 = vector.shape_cast %28 : vector<1x32xf32> to vector<1x1x32xf32>
    %30 = vector.broadcast %29 : vector<1x1x32xf32> to vector<1x8x32xf32>
    %31 = arith.mulf %27, %30 : vector<1x8x32xf32>
    %cst_23 = arith.constant dense<0.000000e+00> : vector<1x8xf32>
    %32 = vector.multi_reduction <add>, %31, %cst_23 [2] : vector<1x8x32xf32> to vector<1x8xf32>
    %33 = vector.broadcast %4 : f32 to vector<1x8xf32>
    %34 = arith.addf %32, %33 : vector<1x8xf32>
    %35 = vector.shape_cast %20 : vector<8x32xf32> to vector<1x8x32xf32>
    %36 = arith.truncf %35 : vector<1x8x32xf32> to vector<1x8x32xbf16>
    %37 = vector.shape_cast %26 : vector<8x32xf32> to vector<1x8x32xf32>
    %38 = arith.truncf %37 : vector<1x8x32xf32> to vector<1x8x32xbf16>
    %39 = tpu.iota {dimensions = array<i32: 0>} : vector<8x8xi32>
    %40 = tpu.iota {dimensions = array<i32: 1>} : vector<8x8xi32>
    %41 = arith.cmpi sgt, %40, %39 : vector<8x8xi32>
    %42 = vector.shape_cast %41 : vector<8x8xi1> to vector<1x8x8xi1>
    %c0_24 = arith.constant 0 : index
    %c0_25 = arith.constant 0 : index
    %c0_26 = arith.constant 0 : index
    %43 = vector.load %arg4[%c0_24, %c0_25, %c0_26] : memref<1x8x8xbf16, #tpu.memory_space<vmem>>, vector<1x8x8xbf16>
    %44 = arith.extf %43 : vector<1x8x8xbf16> to vector<1x8x8xf32>
    %cst_27 = arith.constant 0.000000e+00 : f32
    %45 = vector.broadcast %cst_27 : f32 to vector<1x8x8xf32>
    %46 = arith.cmpf one, %44, %45 : vector<1x8x8xf32>
    %47 = arith.andi %42, %46 : vector<1x8x8xi1>
    %cst_28 = arith.constant -1.000000e+04 : f32
    %48 = vector.broadcast %cst_28 : f32 to vector<1x8x8xf32>
    %49 = arith.select %47, %44, %48 : vector<1x8x8xi1>, vector<1x8x8xf32>
    %cst_29 = arith.constant dense<0xFF800000> : vector<1x8xf32>
    %50 = vector.multi_reduction <maximumf>, %49, %cst_29 [2] : vector<1x8x8xf32> to vector<1x8xf32>
    %51 = vector.shape_cast %50 : vector<1x8xf32> to vector<1x8x1xf32>
    %52 = vector.broadcast %51 : vector<1x8x1xf32> to vector<1x8x8xf32>
    %53 = arith.subf %49, %52 : vector<1x8x8xf32>
    %54 = math.exp %53 : vector<1x8x8xf32>
    %cst_30 = arith.constant dense<0.000000e+00> : vector<1x8xf32>
    %55 = vector.multi_reduction <add>, %54, %cst_30 [2] : vector<1x8x8xf32> to vector<1x8xf32>
    %56 = vector.shape_cast %55 : vector<1x8xf32> to vector<1x8x1xf32>
    %57 = tpu.reciprocal %56 {approx = true} : vector<1x8x1xf32> -> vector<1x8x1xf32>
    %58 = vector.broadcast %0 : f32 to vector<1x8x1xf32>
    %59 = arith.mulf %58, %57 : vector<1x8x1xf32>
    %60 = vector.broadcast %59 : vector<1x8x1xf32> to vector<1x8x8xf32>
    %61 = arith.mulf %54, %60 : vector<1x8x8xf32>
    %c0_31 = arith.constant 0 : index
    %c0_32 = arith.constant 0 : index
    %c0_33 = arith.constant 0 : index
    %62 = vector.load %arg5[%c0_31, %c0_32, %c0_33] : memref<1x8x8xbf16, #tpu.memory_space<vmem>>, vector<1x8x8xbf16>
    %63 = arith.extf %62 : vector<1x8x8xbf16> to vector<1x8x8xf32>
    %64 = math.absf %63 : vector<1x8x8xf32>
    %cst_34 = arith.constant 0.000000e+00 : f32
    %65 = vector.broadcast %cst_34 : f32 to vector<1x8x8xf32>
    %66 = arith.subf %65, %64 : vector<1x8x8xf32>
    %67 = math.exp %66 : vector<1x8x8xf32>
    %68 = math.exp %67 : vector<1x8x8xf32>
    %cst_35 = arith.constant 0.000000e+00 : f32
    %69 = vector.broadcast %cst_35 : f32 to vector<1x8x8xf32>
    %70 = arith.select %42, %69, %68 : vector<1x8x8xi1>, vector<1x8x8xf32>
    %cst_36 = arith.constant dense<0.000000e+00> : vector<1x8xf32>
    %71 = vector.multi_reduction <add>, %70, %cst_36 [2] : vector<1x8x8xf32> to vector<1x8xf32>
    %72 = vector.shape_cast %71 : vector<1x8xf32> to vector<1x8x1xf32>
    %73 = tpu.reciprocal %72 {approx = true} : vector<1x8x1xf32> -> vector<1x8x1xf32>
    %74 = vector.broadcast %1 : f32 to vector<1x8x1xf32>
    %75 = arith.mulf %74, %73 : vector<1x8x1xf32>
    %76 = vector.broadcast %75 : vector<1x8x1xf32> to vector<1x8x8xf32>
    %77 = arith.mulf %70, %76 : vector<1x8x8xf32>
    %78 = arith.addf %61, %77 : vector<1x8x8xf32>
    "tpu.trace_start"() <{level = 10 : i32, message = "bqd,bkd->bqk"}> : () -> ()
    %cst_37 = arith.constant dense<0.000000e+00> : vector<1x8x8xf32>
    %79 = tpu.matmul %36, %38, %cst_37 {dimension_numbers = #tpu.dot_dimension_numbers<[2], [2], [1], [1], [0, 0, 0, 1, 1, 1], [0], [0]>} : vector<1x8x32xbf16>, vector<1x8x32xbf16>, vector<1x8x8xf32> -> vector<1x8x8xf32>
    %cst_38 = arith.constant -1.000000e+09 : f32
    "tpu.trace_stop"() : () -> ()
    %80 = vector.broadcast %cst_38 : f32 to vector<1x8x8xf32>
    %81 = arith.select %42, %80, %79 : vector<1x8x8xi1>, vector<1x8x8xf32>
    %cst_39 = arith.constant dense<0xFF800000> : vector<1x8xf32>
    %82 = vector.multi_reduction <maximumf>, %81, %cst_39 [2] : vector<1x8x8xf32> to vector<1x8xf32>
    %83 = vector.shape_cast %82 : vector<1x8xf32> to vector<1x8x1xf32>
    %84 = vector.broadcast %83 : vector<1x8x1xf32> to vector<1x8x8xf32>
    %85 = arith.subf %81, %84 : vector<1x8x8xf32>
    %86 = math.exp %85 : vector<1x8x8xf32>
    %cst_40 = arith.constant dense<0.000000e+00> : vector<1x8xf32>
    %87 = vector.multi_reduction <add>, %86, %cst_40 [2] : vector<1x8x8xf32> to vector<1x8xf32>
    %88 = vector.shape_cast %87 : vector<1x8xf32> to vector<1x8x1xf32>
    %89 = tpu.reciprocal %88 {approx = true} : vector<1x8x1xf32> -> vector<1x8x1xf32>
    %90 = vector.broadcast %2 : f32 to vector<1x8x1xf32>
    %91 = arith.mulf %90, %89 : vector<1x8x1xf32>
    %92 = vector.broadcast %91 : vector<1x8x1xf32> to vector<1x8x8xf32>
    %93 = arith.mulf %86, %92 : vector<1x8x8xf32>
    %94 = arith.addf %78, %93 : vector<1x8x8xf32>
    %c0_41 = arith.constant 0 : index
    %c0_42 = arith.constant 0 : index
    %c0_43 = arith.constant 0 : index
    %95 = vector.load %arg14[%c0_41, %c0_42, %c0_43] : memref<1x8x8xf32, #tpu.memory_space<vmem>>, vector<1x8x8xf32>
    tpu.vector_store %arg14[%c0_41, %c0_42, %c0_43], %94 {strides = array<i32>} : memref<1x8x8xf32, #tpu.memory_space<vmem>>, vector<1x8x8xf32>,
    %96 = vector.shape_cast %34 : vector<1x8xf32> to vector<1x1x8xf32>
    %97 = vector.broadcast %96 : vector<1x1x8xf32> to vector<1x8x8xf32>
    %98 = arith.mulf %94, %97 : vector<1x8x8xf32>
    %cst_44 = arith.constant dense<0.000000e+00> : vector<1x8xf32>
    %99 = vector.multi_reduction <add>, %98, %cst_44 [2] : vector<1x8x8xf32> to vector<1x8xf32>
    %100 = vector.broadcast %3 : f32 to vector<1x8xf32>
    %101 = arith.addf %99, %100 : vector<1x8xf32>
    %102 = vector.shape_cast %101 : vector<1x8xf32> to vector<1x1x8xf32>
    %c0_45 = arith.constant 0 : index
    %c0_46 = arith.constant 0 : index
    %c0_47 = arith.constant 0 : index
    %103 = vector.load %arg13[%c0_45, %c0_46, %c0_47] : memref<1x1x8xf32, #tpu.memory_space<vmem>>, vector<1x1x8xf32>
    tpu.vector_store %arg13[%c0_45, %c0_46, %c0_47], %102 {strides = array<i32>} : memref<1x1x8xf32, #tpu.memory_space<vmem>>, vector<1x1x8xf32>,
    return
  }
  func.func @transform_0(%arg0: i32) -> i32 {
    %c0_i32 = arith.constant 0 : i32
    %c0_i32_0 = arith.constant 0 : i32
    return %c0_i32 : i32
  }
  func.func @transform_1(%arg0: i32) -> (i32, i32, i32) {
    %c0_i32 = arith.constant 0 : i32
    %c0_i32_0 = arith.constant 0 : i32
    %c0_i32_1 = arith.constant 0 : i32
    return %arg0, %c0_i32, %c0_i32_0 : i32, i32, i32
  }
  func.func @transform_2(%arg0: i32) -> (i32, i32, i32) {
    %c0_i32 = arith.constant 0 : i32
    %c0_i32_0 = arith.constant 0 : i32
    %c0_i32_1 = arith.constant 0 : i32
    return %arg0, %c0_i32, %c0_i32_0 : i32, i32, i32
  }
  func.func @transform_3(%arg0: i32) -> (i32, i32, i32) {
    %c0_i32 = arith.constant 0 : i32
    %c0_i32_0 = arith.constant 0 : i32
    %c0_i32_1 = arith.constant 0 : i32
    return %arg0, %c0_i32, %c0_i32_0 : i32, i32, i32
  }
  func.func @transform_4(%arg0: i32) -> (i32, i32, i32) {
    %c0_i32 = arith.constant 0 : i32
    %c0_i32_0 = arith.constant 0 : i32
    %c0_i32_1 = arith.constant 0 : i32
    return %arg0, %c0_i32, %c0_i32_0 : i32, i32, i32
  }
  func.func @transform_5(%arg0: i32) -> (i32, i32) {
    %c0_i32 = arith.constant 0 : i32
    %c0_i32_0 = arith.constant 0 : i32
    %c0_i32_1 = arith.constant 0 : i32
    return %c0_i32, %c0_i32_0 : i32, i32
  }
  func.func @transform_6(%arg0: i32) -> (i32, i32) {
    %c0_i32 = arith.constant 0 : i32
    %c0_i32_0 = arith.constant 0 : i32
    %c0_i32_1 = arith.constant 0 : i32
    return %c0_i32, %c0_i32_0 : i32, i32
  }
  func.func @transform_7(%arg0: i32) -> (i32, i32) {
    %c0_i32 = arith.constant 0 : i32
    %c0_i32_0 = arith.constant 0 : i32
    %c0_i32_1 = arith.constant 0 : i32
    return %c0_i32, %c0_i32_0 : i32, i32
  }
  func.func @transform_8(%arg0: i32) -> (i32, i32) {
    %c0_i32 = arith.constant 0 : i32
    %c0_i32_0 = arith.constant 0 : i32
    %c0_i32_1 = arith.constant 0 : i32
    return %c0_i32, %c0_i32_0 : i32, i32
  }
  func.func @transform_9(%arg0: i32) -> (i32, i32) {
    %c0_i32 = arith.constant 0 : i32
    %c0_i32_0 = arith.constant 0 : i32
    %c0_i32_1 = arith.constant 0 : i32
    return %c0_i32, %c0_i32_0 : i32, i32
  }
  func.func @transform_10(%arg0: i32) -> (i32, i32) {
    %c0_i32 = arith.constant 0 : i32
    %c0_i32_0 = arith.constant 0 : i32
    %c0_i32_1 = arith.constant 0 : i32
    return %c0_i32, %c0_i32_0 : i32, i32
  }
  func.func @transform_11(%arg0: i32) -> (i32, i32) {
    %c0_i32 = arith.constant 0 : i32
    %c0_i32_0 = arith.constant 0 : i32
    %c0_i32_1 = arith.constant 0 : i32
    return %c0_i32, %c0_i32_0 : i32, i32
  }
  func.func @transform_12(%arg0: i32) -> (i32, i32, i32) {
    %c0_i32 = arith.constant 0 : i32
    %c0_i32_0 = arith.constant 0 : i32
    %c0_i32_1 = arith.constant 0 : i32
    return %arg0, %c0_i32, %c0_i32_0 : i32, i32, i32
  }
  func.func @transform_13(%arg0: i32) -> (i32, i32, i32) {
    %c0_i32 = arith.constant 0 : i32
    %c0_i32_0 = arith.constant 0 : i32
    %c0_i32_1 = arith.constant 0 : i32
    return %arg0, %c0_i32, %c0_i32_0 : i32, i32, i32
  }
}

</mosaic_0001>

<llo_original>
// kernel: tpu_custom_call.1
$region0: #{tpu_custom_call.1}
  #allocation0 [shape = 'u32[]', space=smem, size = 0x4, offset = 0x4, fixed_abs, tag = 'smem constant byte address 0x4 - core index']
  #allocation1 [shape = 'u32[72,128]{1,0:T(1,128)}', space=vmem, size = 0x9000, scoped, tag = 'internal scratch']
  %s0 = inlined_call_operand.hbm [shape: f32[5], index: 0, kind: input, shape index: {}]
  %s1 = inlined_call_operand.vmem [shape: bf16[2,8,64], index: 1, kind: input, shape index: {}]
  %s2 = inlined_call_operand.vmem [shape: bf16[2,8,32], index: 2, kind: input, shape index: {}]
  %s3 = inlined_call_operand.hbm [shape: bf16[2,8,8], index: 3, kind: input, shape index: {}]
  %s4 = inlined_call_operand.hbm [shape: bf16[2,8,8], index: 4, kind: input, shape index: {}]
  %s5 = inlined_call_operand.vmem [shape: bf16[64,32], index: 5, kind: input, shape index: {}]
  %s6 = inlined_call_operand.vmem [shape: f32[1,32], index: 6, kind: input, shape index: {}]
  %s7 = inlined_call_operand.vmem [shape: bf16[32,32], index: 7, kind: input, shape index: {}]
  %s8 = inlined_call_operand.vmem [shape: f32[1,32], index: 8, kind: input, shape index: {}]
  %s9 = inlined_call_operand.vmem [shape: bf16[32,32], index: 9, kind: input, shape index: {}]
  %s10 = inlined_call_operand.vmem [shape: f32[1,32], index: 10, kind: input, shape index: {}]
  %s11 = inlined_call_operand.vmem [shape: f32[1,32], index: 11, kind: input, shape index: {}]
  %s12 = inlined_call_operand.hbm [shape: f32[2,1,8], index: 12, kind: output, shape index: {0}]
  %s13 = inlined_call_operand.hbm [shape: f32[2,8,8], index: 13, kind: output, shape index: {1}]
  %14 = xla_tuple %s12, %s13
  %s15 = sld [smem:[#allocation0]]
  $region101: #{tpu_custom_call.1} parent=0
    _
  %s17 = ssub.s32 1, %s15
  %s18 = scalar_select 0, %s17, %s15
  $region1: #{tpu_custom_call.1} parent=0
    #allocation2 [shape = 'u8[512]{0}', space=smem, size = 0x200, scoped, tag = 'input window, operand 0, single buffered']
    #allocation3 [shape = 's32[2]{0}', space=sflag, size = 0x8, scoped, tag = 'scoped memory for tpu_custom_call.1']
    #allocation4 [shape = 's32[2]{0}', space=sflag, size = 0x8, scoped, tag = 'scoped memory for tpu_custom_call.1']
    #allocation5 [shape = 's32[2]{0}', space=sflag, size = 0x8, scoped, tag = 'scoped memory for tpu_custom_call.1']
    #allocation6 [shape = 'u8[4096]{0}', space=vmem, size = 0x1000, scoped, tag = 'input window, operand 3']
    #allocation7 [shape = 'u8[4096]{0}', space=vmem, size = 0x1000, scoped, tag = 'input window, operand 4']
    #allocation8 [shape = 's32[2]{0}', space=sflag, size = 0x8, scoped, tag = 'scoped memory for tpu_custom_call.1']
    #allocation9 [shape = 'u8[1024]{0}', space=vmem, size = 0x400, scoped, tag = 'output window, operand 0']
    #allocation10 [shape = 'u8[8192]{0}', space=vmem, size = 0x2000, scoped, tag = 'output window, operand 1']
    #allocation11 [shape = 's32[2]{0}', space=sflag, size = 0x8, scoped, tag = 'scoped memory for tpu_custom_call.1']
    %19 = vsyncpa [#allocation5], 0
    %20 = vsyncpa [#allocation3], 0
    %s21 = scalar_lea.sflag [#allocation3], 1
    %22 = vsyncpa %s21, 0
    %23 = vsyncpa [#allocation8], 0
    %s24 = scalar_lea.sflag [#allocation8], 1
    %25 = vsyncpa %s24, 0
    %26 = vsyncpa [#allocation4], 0
    %s27 = scalar_lea.sflag [#allocation4], 1
    %28 = vsyncpa %s27, 0
    %29 = vsyncpa [#allocation11], 0
    %s30 = scalar_lea.sflag [#allocation11], 1
    %31 = vsyncpa %s30, 0
    loop: start=0, step=1, limit=4
    $region2: #{tpu_custom_call.1} parent=1 // loop_pre_header
      _
    $region3: #{tpu_custom_call.1} parent=1 // loop_header
      %s33 = sphi 0, %s37
      %p34 = scmp.ge.s32.totalorder %s33, 4
      %s41 = sphi 0, %s41
      %s43 = sphi 0, %s41
      %s44 = sphi 0, %s43
      %s58 = sphi 0, %s44
      %s64 = sphi 0, %s66
      %s67 = sphi 0, %s64
      %s68 = sphi 0, %s67
      %s84 = sphi 0, %s68
      %s90 = sphi 0, %s92
      %s93 = sphi 0, %s90
      %s94 = sphi 0, %s93
      %s110 = sphi 0, %s94
      %s116 = sphi 0, %s118
      %s119 = sphi 0, %s116
      %s120 = sphi 0, %s119
      %s136 = sphi 0, %s120
      %s142 = sphi 0, %s144
      %s145 = sphi 0, %s142
      %s146 = sphi 0, %s145
      %s162 = sphi 0, %s146
      %s166 = sphi 0, %s166
      %s168 = sphi 0, %s166
      %s169 = sphi 0, %s168
      %s183 = sphi 0, %s169
      %s187 = sphi 0, %s187
      %s189 = sphi 0, %s187
      %s190 = sphi 0, %s189
      %s204 = sphi 0, %s190
      %s208 = sphi 0, %s208
      %s210 = sphi 0, %s208
      %s211 = sphi 0, %s210
      %s225 = sphi 0, %s211
      %s229 = sphi 0, %s229
      %s231 = sphi 0, %s229
      %s232 = sphi 0, %s231
      %s246 = sphi 0, %s232
      %s250 = sphi 0, %s250
      %s252 = sphi 0, %s250
      %s253 = sphi 0, %s252
      %s267 = sphi 0, %s253
      %s271 = sphi 0, %s271
      %s273 = sphi 0, %s271
      %s274 = sphi 0, %s273
      %s288 = sphi 0, %s274
      %s292 = sphi 0, %s292
      %s294 = sphi 0, %s292
      %s295 = sphi 0, %s294
      %s309 = sphi 0, %s295
      %s315 = sphi 0, %s317
      %s318 = sphi 0, %s315
      %s319 = sphi 0, %s318
      %s335 = sphi 0, %s319
      %s341 = sphi 0, %s343
      %s344 = sphi 0, %s341
      %s345 = sphi 0, %s344
      %s361 = sphi 0, %s345
    $region4: #{tpu_custom_call.1} parent=1 // loop_header_branch
      %36 = sbr.rel (%p34) target = $region8
    $region5: #{tpu_custom_call.1} parent=1 // loop_body
      %s38 = ssub.s32 %s33, 1
      %s39 = ssub.s32 %s33, 2
      %s40 = sadd.s32 %s33, 1
      %s42 = sadd.s32 %s41, 1
      %p45 = scmp.eq.s32.totalorder %s33, 1
      %p46 = scmp.ne.s32.totalorder %s41, %s43
      %p47 = scmp.eq.s32.totalorder %s33, 0
      %p48 = por %p46, %p47
      %p49 = scmp.ne.s32.totalorder %s41, %s43
      %p50 = scmp.eq.s32.totalorder %s38, 1
      %p51 = por %p49, %p50
      %p52 = scmp.ne.s32.totalorder %s43, %s44
      %p53 = scmp.eq.s32.totalorder %s38, 0
      %p54 = por %p52, %p53
      %p55 = scmp.ne.s32.totalorder %s43, %s44
      %p56 = scmp.eq.s32.totalorder %s39, 1
      %p57 = por %p55, %p56
      %p59 = scmp.ne.s32.totalorder %s44, %s58
      %p60 = scmp.eq.s32.totalorder %s39, 0
      %p61 = por %p59, %p60
      %s62 = ssub.s32 %s33, %s40
      %p63 = scmp.eq.s32.totalorder %s62, 0
      %s65 = sadd.s32 %s64, 1
      %s66 = scalar_select %p63, %s64, %s65
      %p69 = pneg %p63
      %p70 = scmp.eq.s32.totalorder %s33, 1
      %p71 = por %p69, %p70
      %p72 = scmp.ne.s32.totalorder %s64, %s67
      %p73 = scmp.eq.s32.totalorder %s33, 0
      %p74 = por %p72, %p73
      %p75 = scmp.ne.s32.totalorder %s64, %s67
      %p76 = scmp.eq.s32.totalorder %s38, 1
      %p77 = por %p75, %p76
      %p78 = scmp.ne.s32.totalorder %s67, %s68
      %p79 = scmp.eq.s32.totalorder %s38, 0
      %p80 = por %p78, %p79
      %p81 = scmp.ne.s32.totalorder %s67, %s68
      %p82 = scmp.eq.s32.totalorder %s39, 1
      %p83 = por %p81, %p82
      %p85 = scmp.ne.s32.totalorder %s68, %s84
      %p86 = scmp.eq.s32.totalorder %s39, 0
      %p87 = por %p85, %p86
      %s88 = ssub.s32 %s33, %s40
      %p89 = scmp.eq.s32.totalorder %s88, 0
      %s91 = sadd.s32 %s90, 1
      %s92 = scalar_select %p89, %s90, %s91
      %p95 = pneg %p89
      %p96 = scmp.eq.s32.totalorder %s33, 1
      %p97 = por %p95, %p96
      %p98 = scmp.ne.s32.totalorder %s90, %s93
      %p99 = scmp.eq.s32.totalorder %s33, 0
      %p100 = por %p98, %p99
      %p101 = scmp.ne.s32.totalorder %s90, %s93
      %p102 = scmp.eq.s32.totalorder %s38, 1
      %p103 = por %p101, %p102
      %p104 = scmp.ne.s32.totalorder %s93, %s94
      %p105 = scmp.eq.s32.totalorder %s38, 0
      %p106 = por %p104, %p105
      %p107 = scmp.ne.s32.totalorder %s93, %s94
      %p108 = scmp.eq.s32.totalorder %s39, 1
      %p109 = por %p107, %p108
      %p111 = scmp.ne.s32.totalorder %s94, %s110
      %p112 = scmp.eq.s32.totalorder %s39, 0
      %p113 = por %p111, %p112
      %s114 = ssub.s32 %s33, %s40
      %p115 = scmp.eq.s32.totalorder %s114, 0
      %s117 = sadd.s32 %s116, 1
      %s118 = scalar_select %p115, %s116, %s117
      %p121 = pneg %p115
      %p122 = scmp.eq.s32.totalorder %s33, 1
      %p123 = por %p121, %p122
      %p124 = scmp.ne.s32.totalorder %s116, %s119
      %p125 = scmp.eq.s32.totalorder %s33, 0
      %p126 = por %p124, %p125
      %p127 = scmp.ne.s32.totalorder %s116, %s119
      %p128 = scmp.eq.s32.totalorder %s38, 1
      %p129 = por %p127, %p128
      %p130 = scmp.ne.s32.totalorder %s119, %s120
      %p131 = scmp.eq.s32.totalorder %s38, 0
      %p132 = por %p130, %p131
      %p133 = scmp.ne.s32.totalorder %s119, %s120
      %p134 = scmp.eq.s32.totalorder %s39, 1
      %p135 = por %p133, %p134
      %p137 = scmp.ne.s32.totalorder %s120, %s136
      %p138 = scmp.eq.s32.totalorder %s39, 0
      %p139 = por %p137, %p138
      %s140 = ssub.s32 %s33, %s40
      %p141 = scmp.eq.s32.totalorder %s140, 0
      %s143 = sadd.s32 %s142, 1
      %s144 = scalar_select %p141, %s142, %s143
      %p147 = pneg %p141
      %p148 = scmp.eq.s32.totalorder %s33, 1
      %p149 = por %p147, %p148
      %p150 = scmp.ne.s32.totalorder %s142, %s145
      %p151 = scmp.eq.s32.totalorder %s33, 0
      %p152 = por %p150, %p151
      %p153 = scmp.ne.s32.totalorder %s142, %s145
      %p154 = scmp.eq.s32.totalorder %s38, 1
      %p155 = por %p153, %p154
      %p156 = scmp.ne.s32.totalorder %s145, %s146
      %p157 = scmp.eq.s32.totalorder %s38, 0
      %p158 = por %p156, %p157
      %p159 = scmp.ne.s32.totalorder %s145, %s146
      %p160 = scmp.eq.s32.totalorder %s39, 1
      %p161 = por %p159, %p160
      %p163 = scmp.ne.s32.totalorder %s146, %s162
      %p164 = scmp.eq.s32.totalorder %s39, 0
      %p165 = por %p163, %p164
      %s167 = sadd.s32 %s166, 1
      %p170 = scmp.eq.s32.totalorder %s33, 1
      %p171 = scmp.ne.s32.totalorder %s166, %s168
      %p172 = scmp.eq.s32.totalorder %s33, 0
      %p173 = por %p171, %p172
      %p174 = scmp.ne.s32.totalorder %s166, %s168
      %p175 = scmp.eq.s32.totalorder %s38, 1
      %p176 = por %p174, %p175
      %p177 = scmp.ne.s32.totalorder %s168, %s169
      %p178 = scmp.eq.s32.totalorder %s38, 0
      %p179 = por %p177, %p178
      %p180 = scmp.ne.s32.totalorder %s168, %s169
      %p181 = scmp.eq.s32.totalorder %s39, 1
      %p182 = por %p180, %p181
      %p184 = scmp.ne.s32.totalorder %s169, %s183
      %p185 = scmp.eq.s32.totalorder %s39, 0
      %p186 = por %p184, %p185
      %s188 = sadd.s32 %s187, 1
      %p191 = scmp.eq.s32.totalorder %s33, 1
      %p192 = scmp.ne.s32.totalorder %s187, %s189
      %p193 = scmp.eq.s32.totalorder %s33, 0
      %p194 = por %p192, %p193
      %p195 = scmp.ne.s32.totalorder %s187, %s189
      %p196 = scmp.eq.s32.totalorder %s38, 1
      %p197 = por %p195, %p196
      %p198 = scmp.ne.s32.totalorder %s189, %s190
      %p199 = scmp.eq.s32.totalorder %s38, 0
      %p200 = por %p198, %p199
      %p201 = scmp.ne.s32.totalorder %s189, %s190
      %p202 = scmp.eq.s32.totalorder %s39, 1
      %p203 = por %p201, %p202
      %p205 = scmp.ne.s32.totalorder %s190, %s204
      %p206 = scmp.eq.s32.totalorder %s39, 0
      %p207 = por %p205, %p206
      %s209 = sadd.s32 %s208, 1
      %p212 = scmp.eq.s32.totalorder %s33, 1
      %p213 = scmp.ne.s32.totalorder %s208, %s210
      %p214 = scmp.eq.s32.totalorder %s33, 0
      %p215 = por %p213, %p214
      %p216 = scmp.ne.s32.totalorder %s208, %s210
      %p217 = scmp.eq.s32.totalorder %s38, 1
      %p218 = por %p216, %p217
      %p219 = scmp.ne.s32.totalorder %s210, %s211
      %p220 = scmp.eq.s32.totalorder %s38, 0
      %p221 = por %p219, %p220
      %p222 = scmp.ne.s32.totalorder %s210, %s211
      %p223 = scmp.eq.s32.totalorder %s39, 1
      %p224 = por %p222, %p223
      %p226 = scmp.ne.s32.totalorder %s211, %s225
      %p227 = scmp.eq.s32.totalorder %s39, 0
      %p228 = por %p226, %p227
      %s230 = sadd.s32 %s229, 1
      %p233 = scmp.eq.s32.totalorder %s33, 1
      %p234 = scmp.ne.s32.totalorder %s229, %s231
      %p235 = scmp.eq.s32.totalorder %s33, 0
      %p236 = por %p234, %p235
      %p237 = scmp.ne.s32.totalorder %s229, %s231
      %p238 = scmp.eq.s32.totalorder %s38, 1
      %p239 = por %p237, %p238
      %p240 = scmp.ne.s32.totalorder %s231, %s232
      %p241 = scmp.eq.s32.totalorder %s38, 0
      %p242 = por %p240, %p241
      %p243 = scmp.ne.s32.totalorder %s231, %s232
      %p244 = scmp.eq.s32.totalorder %s39, 1
      %p245 = por %p243, %p244
      %p247 = scmp.ne.s32.totalorder %s232, %s246
      %p248 = scmp.eq.s32.totalorder %s39, 0
      %p249 = por %p247, %p248
      %s251 = sadd.s32 %s250, 1
      %p254 = scmp.eq.s32.totalorder %s33, 1
      %p255 = scmp.ne.s32.totalorder %s250, %s252
      %p256 = scmp.eq.s32.totalorder %s33, 0
      %p257 = por %p255, %p256
      %p258 = scmp.ne.s32.totalorder %s250, %s252
      %p259 = scmp.eq.s32.totalorder %s38, 1
      %p260 = por %p258, %p259
      %p261 = scmp.ne.s32.totalorder %s252, %s253
      %p262 = scmp.eq.s32.totalorder %s38, 0
      %p263 = por %p261, %p262
      %p264 = scmp.ne.s32.totalorder %s252, %s253
      %p265 = scmp.eq.s32.totalorder %s39, 1
      %p266 = por %p264, %p265
      %p268 = scmp.ne.s32.totalorder %s253, %s267
      %p269 = scmp.eq.s32.totalorder %s39, 0
      %p270 = por %p268, %p269
      %s272 = sadd.s32 %s271, 1
      %p275 = scmp.eq.s32.totalorder %s33, 1
      %p276 = scmp.ne.s32.totalorder %s271, %s273
      %p277 = scmp.eq.s32.totalorder %s33, 0
      %p278 = por %p276, %p277
      %p279 = scmp.ne.s32.totalorder %s271, %s273
      %p280 = scmp.eq.s32.totalorder %s38, 1
      %p281 = por %p279, %p280
      %p282 = scmp.ne.s32.totalorder %s273, %s274
      %p283 = scmp.eq.s32.totalorder %s38, 0
      %p284 = por %p282, %p283
      %p285 = scmp.ne.s32.totalorder %s273, %s274
      %p286 = scmp.eq.s32.totalorder %s39, 1
      %p287 = por %p285, %p286
      %p289 = scmp.ne.s32.totalorder %s274, %s288
      %p290 = scmp.eq.s32.totalorder %s39, 0
      %p291 = por %p289, %p290
      %s293 = sadd.s32 %s292, 1
      %p296 = scmp.eq.s32.totalorder %s33, 1
      %p297 = scmp.ne.s32.totalorder %s292, %s294
      %p298 = scmp.eq.s32.totalorder %s33, 0
      %p299 = por %p297, %p298
      %p300 = scmp.ne.s32.totalorder %s292, %s294
      %p301 = scmp.eq.s32.totalorder %s38, 1
      %p302 = por %p300, %p301
      %p303 = scmp.ne.s32.totalorder %s294, %s295
      %p304 = scmp.eq.s32.totalorder %s38, 0
      %p305 = por %p303, %p304
      %p306 = scmp.ne.s32.totalorder %s294, %s295
      %p307 = scmp.eq.s32.totalorder %s39, 1
      %p308 = por %p306, %p307
      %p310 = scmp.ne.s32.totalorder %s295, %s309
      %p311 = scmp.eq.s32.totalorder %s39, 0
      %p312 = por %p310, %p311
      %s313 = ssub.s32 %s33, %s40
      %p314 = scmp.eq.s32.totalorder %s313, 0
      %s316 = sadd.s32 %s315, 1
      %s317 = scalar_select %p314, %s315, %s316
      %p320 = pneg %p314
      %p321 = scmp.eq.s32.totalorder %s33, 1
      %p322 = por %p320, %p321
      %p323 = scmp.ne.s32.totalorder %s315, %s318
      %p324 = scmp.eq.s32.totalorder %s33, 0
      %p325 = por %p323, %p324
      %p326 = scmp.ne.s32.totalorder %s315, %s318
      %p327 = scmp.eq.s32.totalorder %s38, 1
      %p328 = por %p326, %p327
      %p329 = scmp.ne.s32.totalorder %s318, %s319
      %p330 = scmp.eq.s32.totalorder %s38, 0
      %p331 = por %p329, %p330
      %p332 = scmp.ne.s32.totalorder %s318, %s319
      %p333 = scmp.eq.s32.totalorder %s39, 1
      %p334 = por %p332, %p333
      %p336 = scmp.ne.s32.totalorder %s319, %s335
      %p337 = scmp.eq.s32.totalorder %s39, 0
      %p338 = por %p336, %p337
      %s339 = ssub.s32 %s33, %s40
      %p340 = scmp.eq.s32.totalorder %s339, 0
      %s342 = sadd.s32 %s341, 1
      %s343 = scalar_select %p340, %s341, %s342
      %p346 = pneg %p340
      %p347 = scmp.eq.s32.totalorder %s33, 1
      %p348 = por %p346, %p347
      %p349 = scmp.ne.s32.totalorder %s341, %s344
      %p350 = scmp.eq.s32.totalorder %s33, 0
      %p351 = por %p349, %p350
      %p352 = scmp.ne.s32.totalorder %s341, %s344
      %p353 = scmp.eq.s32.totalorder %s38, 1
      %p354 = por %p352, %p353
      %p355 = scmp.ne.s32.totalorder %s344, %s345
      %p356 = scmp.eq.s32.totalorder %s38, 0
      %p357 = por %p355, %p356
      %p358 = scmp.ne.s32.totalorder %s344, %s345
      %p359 = scmp.eq.s32.totalorder %s39, 1
      %p360 = por %p358, %p359
      %p362 = scmp.ne.s32.totalorder %s345, %s361
      %p363 = scmp.eq.s32.totalorder %s39, 0
      %p364 = por %p362, %p363
      %p365 = scmp.le.s32.totalorder 1, %s33
      %p366 = scmp.lt.s32.totalorder %s33, 3
      %p367 = pnand %p365, %p366
      %p368 = pneg %p367
      // Predicated region
      $region9: #{tpu_custom_call.1} parent=5 // pred_check
        _
      $region10: #{tpu_custom_call.1} parent=5 // pred_check_branch
        %370 = sbr.rel (%p367) target = $region12
      $region11: #{tpu_custom_call.1} parent=5 // pred_region
        %s371 = ssub.s32 %s33, 1
        // Predicated region
        $region13: #{tpu_custom_call.1} parent=11 // pred_check
          %p372 = pneg %p54
        $region14: #{tpu_custom_call.1} parent=11 // pred_check_branch
          %374 = sbr.rel (%p372) target = $region16
        $region15: #{tpu_custom_call.1} parent=11 // pred_region
          %376 = vsyncadd [#allocation5], 0
          %s378 = sshll.u32 %s0, 4
          %s379 = int_to_ptr.hbm [resolvable:$true] %s378
          %381 = dma.hbm_to_smem %s379, 16, [#allocation2], [#allocation5]
        $region16: #{tpu_custom_call.1} parent=11 // pred_fallthru
          _
        // Predicated region
        $region17: #{tpu_custom_call.1} parent=11 // pred_check
          %p382 = pneg %p179
        $region18: #{tpu_custom_call.1} parent=11 // pred_check_branch
          %384 = sbr.rel (%p382) target = $region20
        $region19: #{tpu_custom_call.1} parent=11 // pred_region
          _
        $region20: #{tpu_custom_call.1} parent=11 // pred_fallthru
          _
        // Predicated region
        $region21: #{tpu_custom_call.1} parent=11 // pred_check
          %p385 = pneg %p200
        $region22: #{tpu_custom_call.1} parent=11 // pred_check_branch
          %387 = sbr.rel (%p385) target = $region24
        $region23: #{tpu_custom_call.1} parent=11 // pred_region
          _
        $region24: #{tpu_custom_call.1} parent=11 // pred_fallthru
          _
        // Predicated region
        $region25: #{tpu_custom_call.1} parent=11 // pred_check
          %p388 = pneg %p221
        $region26: #{tpu_custom_call.1} parent=11 // pred_check_branch
          %390 = sbr.rel (%p388) target = $region28
        $region27: #{tpu_custom_call.1} parent=11 // pred_region
          _
        $region28: #{tpu_custom_call.1} parent=11 // pred_fallthru
          _
        // Predicated region
        $region29: #{tpu_custom_call.1} parent=11 // pred_check
          %p391 = pneg %p242
        $region30: #{tpu_custom_call.1} parent=11 // pred_check_branch
          %393 = sbr.rel (%p391) target = $region32
        $region31: #{tpu_custom_call.1} parent=11 // pred_region
          _
        $region32: #{tpu_custom_call.1} parent=11 // pred_fallthru
          _
        // Predicated region
        $region33: #{tpu_custom_call.1} parent=11 // pred_check
          %p394 = pneg %p263
        $region34: #{tpu_custom_call.1} parent=11 // pred_check_branch
          %396 = sbr.rel (%p394) target = $region36
        $region35: #{tpu_custom_call.1} parent=11 // pred_region
          _
        $region36: #{tpu_custom_call.1} parent=11 // pred_fallthru
          _
        // Predicated region
        $region37: #{tpu_custom_call.1} parent=11 // pred_check
          %p397 = pneg %p284
        $region38: #{tpu_custom_call.1} parent=11 // pred_check_branch
          %399 = sbr.rel (%p397) target = $region40
        $region39: #{tpu_custom_call.1} parent=11 // pred_region
          _
        $region40: #{tpu_custom_call.1} parent=11 // pred_fallthru
          _
        // Predicated region
        $region41: #{tpu_custom_call.1} parent=11 // pred_check
          %p400 = pneg %p305
        $region42: #{tpu_custom_call.1} parent=11 // pred_check_branch
          %402 = sbr.rel (%p400) target = $region44
        $region43: #{tpu_custom_call.1} parent=11 // pred_region
          _
        $region44: #{tpu_custom_call.1} parent=11 // pred_fallthru
          _
      $region12: #{tpu_custom_call.1} parent=5 // pred_fallthru
        _
      %p403 = scmp.lt.s32.totalorder %s33, 2
      // Predicated region
      $region45: #{tpu_custom_call.1} parent=5 // pred_check
        %p404 = pneg %p403
      $region46: #{tpu_custom_call.1} parent=5 // pred_check_branch
        %406 = sbr.rel (%p404) target = $region48
      $region47: #{tpu_custom_call.1} parent=5 // pred_region
        // Predicated region
        $region49: #{tpu_custom_call.1} parent=47 // pred_check
          %p407 = pneg %p74
        $region50: #{tpu_custom_call.1} parent=47 // pred_check_branch
          %409 = sbr.rel (%p407) target = $region52
        $region51: #{tpu_custom_call.1} parent=47 // pred_region
          %p410 = scmp.lt.s32.totalorder %s33, 1
          %s411 = scalar_select %p410, %s33, 1
          %s412 = smul.addr %s411, 4
          %s413 = scalar_lea.vmem %s1, %s412
        $region52: #{tpu_custom_call.1} parent=47 // pred_fallthru
          _
        // Predicated region
        $region53: #{tpu_custom_call.1} parent=47 // pred_check
          %p414 = pneg %p100
        $region54: #{tpu_custom_call.1} parent=47 // pred_check_branch
          %416 = sbr.rel (%p414) target = $region56
        $region55: #{tpu_custom_call.1} parent=47 // pred_region
          %p417 = scmp.lt.s32.totalorder %s33, 1
          %s418 = scalar_select %p417, %s33, 1
          %s419 = smul.addr %s418, 4
          %s420 = scalar_lea.vmem %s2, %s419
        $region56: #{tpu_custom_call.1} parent=47 // pred_fallthru
          _
        // Predicated region
        $region57: #{tpu_custom_call.1} parent=47 // pred_check
          %p421 = pneg %p126
        $region58: #{tpu_custom_call.1} parent=47 // pred_check_branch
          %423 = sbr.rel (%p421) target = $region60
        $region59: #{tpu_custom_call.1} parent=47 // pred_region
          %s424 = sand.u32 %s116, 1
          %s425 = scalar_lea.sflag [#allocation3], %s424
          %s426 = sand.u32 %s116, 1
          %s427 = smul.addr %s426, 4
          %s428 = scalar_lea.vmem [#allocation6], %s427
          %430 = vsyncadd %s425, 0
          %s431 = smul.addr %s33, 4
          %s432 = scalar_lea.hbm %s3, %s431
          %s434 = sshll.u32 %s432, 4
          %s435 = int_to_ptr.hbm [resolvable:$true] %s434
          %s436 = sshll.u32 %s428, 4
          %s437 = int_to_ptr.vmem [resolvable:$true] %s436
          %439 = dma.hbm_to_vmem [thread:$0]  %s435, 64, %s437, %s425
        $region60: #{tpu_custom_call.1} parent=47 // pred_fallthru
          _
        // Predicated region
        $region61: #{tpu_custom_call.1} parent=47 // pred_check
          %p440 = pneg %p152
        $region62: #{tpu_custom_call.1} parent=47 // pred_check_branch
          %442 = sbr.rel (%p440) target = $region64
        $region63: #{tpu_custom_call.1} parent=47 // pred_region
          %s443 = sand.u32 %s142, 1
          %s444 = scalar_lea.sflag [#allocation8], %s443
          %s445 = sand.u32 %s142, 1
          %s446 = smul.addr %s445, 4
          %s447 = scalar_lea.vmem [#allocation7], %s446
          %449 = vsyncadd %s444, 0
          %s450 = smul.addr %s33, 4
          %s451 = scalar_lea.hbm %s4, %s450
          %s453 = sshll.u32 %s451, 4
          %s454 = int_to_ptr.hbm [resolvable:$true] %s453
          %s455 = sshll.u32 %s447, 4
          %s456 = int_to_ptr.vmem [resolvable:$true] %s455
          %458 = dma.hbm_to_vmem [thread:$0]  %s454, 64, %s456, %s444
        $region64: #{tpu_custom_call.1} parent=47 // pred_fallthru
          _
      $region48: #{tpu_custom_call.1} parent=5 // pred_fallthru
        _
      %p459 = scmp.le.s32.totalorder 1, %s33
      %p460 = scmp.lt.s32.totalorder %s33, 3
      %p461 = pnand %p459, %p460
      %p462 = pneg %p461
      // Predicated region
      $region65: #{tpu_custom_call.1} parent=5 // pred_check
        _
      $region66: #{tpu_custom_call.1} parent=5 // pred_check_branch
        %464 = sbr.rel (%p461) target = $region68
      $region67: #{tpu_custom_call.1} parent=5 // pred_region
        %s465 = ssub.s32 %s33, 1
        // Predicated region
        $region69: #{tpu_custom_call.1} parent=67 // pred_check
          %p466 = pneg %p54
        $region70: #{tpu_custom_call.1} parent=67 // pred_check_branch
          %468 = sbr.rel (%p466) target = $region72
        $region71: #{tpu_custom_call.1} parent=67 // pred_region
          %470 = dma.done [#allocation5], 16
        $region72: #{tpu_custom_call.1} parent=67 // pred_fallthru
          _
        %s471 = sand.u32 %s119, 1
        %s472 = scalar_lea.sflag [#allocation3], %s471
        %s473 = sand.u32 %s119, 1
        %s474 = smul.addr %s473, 4
        %s475 = scalar_lea.vmem [#allocation6], %s474
        // Predicated region
        $region73: #{tpu_custom_call.1} parent=67 // pred_check
          %p476 = pneg %p132
        $region74: #{tpu_custom_call.1} parent=67 // pred_check_branch
          %478 = sbr.rel (%p476) target = $region76
        $region75: #{tpu_custom_call.1} parent=67 // pred_region
          %480 = dma.done %s472, 64
        $region76: #{tpu_custom_call.1} parent=67 // pred_fallthru
          _
        %s481 = sand.u32 %s145, 1
        %s482 = scalar_lea.sflag [#allocation8], %s481
        %s483 = sand.u32 %s145, 1
        %s484 = smul.addr %s483, 4
        %s485 = scalar_lea.vmem [#allocation7], %s484
        // Predicated region
        $region77: #{tpu_custom_call.1} parent=67 // pred_check
          %p486 = pneg %p158
        $region78: #{tpu_custom_call.1} parent=67 // pred_check_branch
          %488 = sbr.rel (%p486) target = $region80
        $region79: #{tpu_custom_call.1} parent=67 // pred_region
          %490 = dma.done %s482, 64
        $region80: #{tpu_custom_call.1} parent=67 // pred_fallthru
          _
        %491 = sfence
        %p492 = pneg %p54
        %p493 = pneg %p51
        %p494 = scmp.lt.s32.totalorder %s38, 1
        %s495 = scalar_select %p494, %s38, 1
        %s496 = smul.addr %s495, 4
        %s497 = scalar_lea.vmem %s1, %s496
        %p498 = pneg %p80
        %p499 = pneg %p77
        %p500 = scmp.lt.s32.totalorder %s38, 1
        %s501 = scalar_select %p500, %s38, 1
        %s502 = smul.addr %s501, 4
        %s503 = scalar_lea.vmem %s2, %s502
        %p504 = pneg %p106
        %p505 = pneg %p103
        %s506 = sand.u32 %s119, 1
        %s507 = scalar_lea.sflag [#allocation3], %s506
        %s508 = sand.u32 %s119, 1
        %s509 = smul.addr %s508, 4
        %s510 = scalar_lea.vmem [#allocation6], %s509
        %p511 = pneg %p132
        %p512 = pneg %p129
        %s513 = sand.u32 %s145, 1
        %s514 = scalar_lea.sflag [#allocation8], %s513
        %s515 = sand.u32 %s145, 1
        %s516 = smul.addr %s515, 4
        %s517 = scalar_lea.vmem [#allocation7], %s516
        %p518 = pneg %p158
        %p519 = pneg %p155
        %p520 = pneg %p179
        %p521 = pneg %p176
        %p522 = pneg %p200
        %p523 = pneg %p197
        %p524 = pneg %p221
        %p525 = pneg %p218
        %p526 = pneg %p242
        %p527 = pneg %p239
        %p528 = pneg %p263
        %p529 = pneg %p260
        %p530 = pneg %p284
        %p531 = pneg %p281
        %p532 = pneg %p305
        %p533 = pneg %p302
        %p534 = pneg %p331
        %p535 = pneg %p328
        %s536 = sand.u32 %s318, 1
        %s537 = scalar_lea.sflag [#allocation4], %s536
        %s538 = sand.u32 %s318, 1
        %s539 = scalar_lea.vmem [#allocation9], %s538
        %p540 = pneg %p357
        %p541 = pneg %p354
        %s542 = sand.u32 %s344, 1
        %s543 = scalar_lea.sflag [#allocation11], %s542
        %s544 = sand.u32 %s344, 1
        %s545 = smul.addr %s544, 8
        %s546 = scalar_lea.vmem [#allocation10], %s545
        %p547 = scmp.lt.s32.totalorder %s38, 1
        %s548 = scalar_select %p547, %s38, 1
        %s549 = smul.addr %s548, 4
        %s550 = scalar_lea.vmem %s1, %s549
        %p551 = scmp.lt.s32.totalorder %s38, 1
        %s552 = scalar_select %p551, %s38, 1
        %s553 = smul.addr %s552, 4
        %s554 = scalar_lea.vmem %s2, %s553
        %s556 = sld [smem:[#allocation2]]
        %s557 = sld [smem:[#allocation2 + $0x1]]
        %s558 = sld [smem:[#allocation2 + $0x2]]
        %s559 = sld [smem:[#allocation2 + $0x3]]
        %s560 = sld [smem:[#allocation2 + $0x4]]
        %v561 = vld [vmem:[%s550] sm:$0xf]
        %v562 = vld [vmem:[%s5] sm:$0xf]
        %v563 = vld [vmem:[%s5 + $0x4] sm:$0xf]
        %v564 = vld [vmem:[%s5 + $0x8] sm:$0xf]
        %v565 = vld [vmem:[%s5 + $0xc] sm:$0xf]
        %v566 = vld [vmem:[%s5 + $0x10] sm:$0xf]
        %v567 = vld [vmem:[%s5 + $0x14] sm:$0xf]
        %v568 = vld [vmem:[%s5 + $0x18] sm:$0xf]
        %v569 = vld [vmem:[%s5 + $0x1c] sm:$0xf]
        %v570 = vld [vmem:[%s6] sm:$0x1]
        %v572 = vperm.slane %v570, 0
        %v582 = vunpack.c.l.b16 %v562
        %v583 = vunpack.c.l.b16 %v563
        %v584 = vunpack.c.l.b16 %v564
        %v585 = vunpack.c.l.b16 %v565
        %v586 = vunpack.c.l.b16 %v566
        %v587 = vunpack.c.l.b16 %v567
        %v588 = vunpack.c.l.b16 %v568
        %v589 = vunpack.c.l.b16 %v569
        %v590 = vpack.c.b16 %v583, %v582
        %v591 = vpack.c.b16 %v585, %v584
        %v592 = vpack.c.b16 %v587, %v586
        %v593 = vpack.c.b16 %v589, %v588
        %vm598 = vcmask 523264
        %v600 = vsel %vm598, %v561, 0
        %602 = vmatpush.bf16.msra.mxu0 0
        %603 = vmatpush.bf16.msra.mxu0 0
        %604 = vmatpush.bf16.msra.mxu0 0
        %605 = vmatpush.bf16.msra.mxu0 0
        %606 = vmatpush.bf16.msra.mxu0 %v593
        %607 = vmatpush.bf16.msra.mxu0 %v592
        %608 = vmatpush.bf16.msra.mxu0 %v591
        %609 = vmatpush.bf16.msra.mxu0 %v590
        %610 = vmatmul.bf16.gmra.mxu0 %v600
        %v611 = vpop.f32.mrf.mxu0
        %v612 = vadd.f32 %v572, %v611
        %v613 = vpop.f32.mrf.mxu0
        %614 = vdwg.mxu0
        %v615 = vmax.f32 %v612, 0.0
        %v616 = vld [vmem:[%s554] sm:$0xf]
        %v617 = vld [vmem:[%s7] sm:$0xf]
        %v618 = vld [vmem:[%s7 + $0x4] sm:$0xf]
        %v619 = vld [vmem:[%s7 + $0x8] sm:$0xf]
        %v620 = vld [vmem:[%s7 + $0xc] sm:$0xf]
        %v621 = vld [vmem:[%s8] sm:$0x1]
        %v623 = vperm.slane %v621, 0
        %v629 = vunpack.c.l.b16 %v617
        %v630 = vunpack.c.l.b16 %v618
        %v631 = vunpack.c.l.b16 %v619
        %v632 = vunpack.c.l.b16 %v620
        %v633 = vpack.c.b16 %v630, %v629
        %v634 = vpack.c.b16 %v632, %v631
        %vm637 = vcmask 261120
        %v639 = vsel %vm637, %v616, 0
        %641 = vmatpush.bf16.msra.mxu0 0
        %642 = vmatpush.bf16.msra.mxu0 0
        %643 = vmatpush.bf16.msra.mxu0 0
        %644 = vmatpush.bf16.msra.mxu0 0
        %645 = vmatpush.bf16.msra.mxu0 0
        %646 = vmatpush.bf16.msra.mxu0 0
        %647 = vmatpush.bf16.msra.mxu0 %v634
        %648 = vmatpush.bf16.msra.mxu0 %v633
        %649 = vmatmul.bf16.gmra.mxu0 %v639
        %v650 = vpop.f32.mrf.mxu0
        %v651 = vadd.f32 %v623, %v650
        %v652 = vpop.f32.mrf.mxu0
        %653 = vdwg.mxu0
        %v654 = vpack.c.bf16 %v615, %v615
        %v655 = vld [vmem:[%s9] sm:$0xf]
        %v656 = vld [vmem:[%s9 + $0x4] sm:$0xf]
        %v657 = vld [vmem:[%s9 + $0x8] sm:$0xf]
        %v658 = vld [vmem:[%s9 + $0xc] sm:$0xf]
        %v659 = vld [vmem:[%s10] sm:$0x1]
        %v661 = vperm.slane %v659, 0
        %v667 = vunpack.c.l.b16 %v655
        %v668 = vunpack.c.l.b16 %v656
        %v669 = vunpack.c.l.b16 %v657
        %v670 = vunpack.c.l.b16 %v658
        %v671 = vpack.c.b16 %v668, %v667
        %v672 = vpack.c.b16 %v670, %v669
        %v676 = vsel %vm637, %v654, 0
        %678 = vmatpush.bf16.msra.mxu0 0
        %679 = vmatpush.bf16.msra.mxu0 0
        %680 = vmatpush.bf16.msra.mxu0 0
        %681 = vmatpush.bf16.msra.mxu0 0
        %682 = vmatpush.bf16.msra.mxu0 0
        %683 = vmatpush.bf16.msra.mxu0 0
        %684 = vmatpush.bf16.msra.mxu0 %v672
        %685 = vmatpush.bf16.msra.mxu0 %v671
        %686 = vmatmul.bf16.gmra.mxu0 %v676
        %v687 = vpop.f32.mrf.mxu0
        %v688 = vadd.f32 %v661, %v687
        %v689 = vpop.f32.mrf.mxu0
        %690 = vdwg.mxu0
        %v691 = vld [vmem:[%s11] sm:$0x1]
        %v693 = vperm.slane %v691, 0
        %v695 = vmul.f32 %v615, %v693
        %v696 = vsel %vm637, %v695, 0.0
        %697 = vadd.xlane.f32.xlu0 %v696
        %v698 = vpop.xlane.xlu0 %697
        %v699 = vstv %s560
        %v700 = vadd.f32 %v698, %v699
        %v701 = vpack.c.bf16 %v651, %v651
        %v702 = vpack.c.bf16 %v688, %v688
        %v703 = vlaneseq
        %v704 = vshrl.u32 %v703, 7
        %v705 = vlaneseq
        %v706 = vand.u32 %v705, 127
        %vm707 = vcmp.gt.s32.totalorder %v706, %v704
        %v708 = vld [vmem:[%s475] sm:$0xf]
        %v709 = vunpack.c.l.bf16 %v708
        %vm710 = vcmp.ne.f32.partialorder %v709, 0.0
        %vm711 = vmand %vm707, %vm710
        %v712 = vsel %vm711, %v709, -10000.0
        %vm713 = vcmask 64512
        %v714 = vsel %vm713, %v712, -inf
        %715 = vmax.xlane.f32.xlu0 %v714
        %v716 = vpop.xlane.xlu0 %715
        %v717 = vsub.f32 %v712, %v716
        %v718 = vmul.f32 %v717, 1.442695
        %v719 = vpow.pop %v718
        %v720 = vsel %vm713, %v719, 0.0
        %721 = vadd.xlane.f32.xlu0 %v720
        %v722 = vpop.xlane.xlu0 %721
        %v723 = vrcp.pop %v722
        %v724 = vstv %s556
        %v725 = vmul.f32 %v724, %v723
        %v726 = vmul.f32 %v719, %v725
        %v727 = vld [vmem:[%s485] sm:$0xf]
        %v728 = vunpack.c.l.bf16 %v727
        %v729 = vand.u32 2147483647, %v728
        %v730 = vsub.f32 0.0, %v729
        %v731 = vmul.f32 %v730, 1.442695
        %v732 = vpow.pop %v731
        %v733 = vmul.f32 %v732, 1.442695
        %v734 = vpow.pop %v733
        %v735 = vsel %vm707, 0.0, %v734
        %v736 = vsel %vm713, %v735, 0.0
        %737 = vadd.xlane.f32.xlu0 %v736
        %v738 = vpop.xlane.xlu0 %737
        %v739 = vrcp.pop %v738
        %v740 = vstv %s557
        %v741 = vmul.f32 %v740, %v739
        %v742 = vmul.f32 %v735, %v741
        %v743 = vadd.f32 %v726, %v742
        %v745 = vsel %vm637, %v701, 0
        %v748 = vsel %vm637, %v702, 0
        %750 = vmatpush.bf16.xpose.msra.mxu0 0
        %751 = vmatpush.bf16.xpose.msra.mxu0 0
        %752 = vmatpush.bf16.xpose.msra.mxu0 0
        %753 = vmatpush.bf16.xpose.msra.mxu0 0
        %754 = vmatpush.bf16.xpose.msra.mxu0 0
        %755 = vmatpush.bf16.xpose.msra.mxu0 0
        %756 = vmatpush.bf16.xpose.msra.mxu0 0
        %757 = vmatpush.bf16.xpose.msra.mxu0 %v748
        %758 = vmatmul.bf16.gmra.mxu0 %v745
        %v759 = vpop.f32.mrf.mxu0
        %v760 = vadd.f32 0.0, %v759
        %v761 = vpop.f32.mrf.mxu0
        %762 = vdwg.mxu0
        %v763 = vsel %vm707, -1e+09, %v760
        %v764 = vsel %vm713, %v763, -inf
        %765 = vmax.xlane.f32.xlu0 %v764
        %v766 = vpop.xlane.xlu0 %765
        %v767 = vsub.f32 %v763, %v766
        %v768 = vmul.f32 %v767, 1.442695
        %v769 = vpow.pop %v768
        %v770 = vsel %vm713, %v769, 0.0
        %771 = vadd.xlane.f32.xlu0 %v770
        %v772 = vpop.xlane.xlu0 %771
        %v773 = vrcp.pop %v772
        %v774 = vstv %s558
        %v775 = vmul.f32 %v774, %v773
        %v776 = vmul.f32 %v769, %v775
        %v777 = vadd.f32 %v743, %v776
        %778 = vst.msk [vmem:[%s546] sm:$0xff] %vm713, %v777
        %v780 = vperm.slane %v700, %v706
        %vm781 = vcmask 1042434
        %v782 = vsel %vm781, %v780, %v780
        %vm783 = vcmask 1043459
        %v784 = vsel %vm783, %v780, %v782
        %vm785 = vcmask 1044484
        %v786 = vsel %vm785, %v780, %v784
        %vm787 = vcmask 1045509
        %v788 = vsel %vm787, %v780, %v786
        %vm789 = vcmask 1046534
        %v790 = vsel %vm789, %v780, %v788
        %vm791 = vcmask 1047559
        %v792 = vsel %vm791, %v780, %v790
        %v794 = vmul.f32 %v777, %v792
        %v795 = vsel %vm713, %v794, 0.0
        %796 = vadd.xlane.f32.xlu0 %v795
        %v797 = vpop.xlane.xlu0 %796
        %v798 = vstv %s559
        %v799 = vadd.f32 %v797, %v798
        %v801 = vperm.slane %v799, %v706
        %vm803 = vcmask 57344
        %804 = vst.msk [vmem:[%s539] sm:$0x1] %vm803, %v801
        %s805 = sand.u32 %s318, 1
        %s806 = scalar_lea.sflag [#allocation4], %s805
        %s807 = sand.u32 %s318, 1
        %s808 = scalar_lea.vmem [#allocation9], %s807
        %s809 = sand.u32 %s344, 1
        %s810 = scalar_lea.sflag [#allocation11], %s809
        %s811 = sand.u32 %s344, 1
        %s812 = smul.addr %s811, 8
        %s813 = scalar_lea.vmem [#allocation10], %s812
        // Predicated region
        $region81: #{tpu_custom_call.1} parent=67 // pred_check
          %p814 = pneg %p328
        $region82: #{tpu_custom_call.1} parent=67 // pred_check_branch
          %816 = sbr.rel (%p814) target = $region84
        $region83: #{tpu_custom_call.1} parent=67 // pred_region
          %818 = vsyncadd %s806, 0
          %s819 = scalar_lea.hbm %s12, %s38
          %s821 = sshll.u32 %s808, 4
          %s822 = int_to_ptr.vmem [resolvable:$true] %s821
          %s823 = sshll.u32 %s819, 4
          %s824 = int_to_ptr.hbm [resolvable:$true] %s823
          %826 = dma.vmem_to_hbm [thread:$0]  %s822, 16, %s824, %s806
        $region84: #{tpu_custom_call.1} parent=67 // pred_fallthru
          _
        // Predicated region
        $region85: #{tpu_custom_call.1} parent=67 // pred_check
          %p827 = pneg %p354
        $region86: #{tpu_custom_call.1} parent=67 // pred_check_branch
          %829 = sbr.rel (%p827) target = $region88
        $region87: #{tpu_custom_call.1} parent=67 // pred_region
          %831 = vsyncadd %s810, 0
          %s832 = smul.addr %s38, 8
          %s833 = scalar_lea.hbm %s13, %s832
          %s835 = sshll.u32 %s813, 4
          %s836 = int_to_ptr.vmem [resolvable:$true] %s835
          %s837 = sshll.u32 %s833, 4
          %s838 = int_to_ptr.hbm [resolvable:$true] %s837
          %840 = dma.vmem_to_hbm [thread:$0]  %s836, 128, %s838, %s810
        $region88: #{tpu_custom_call.1} parent=67 // pred_fallthru
          _
      $region68: #{tpu_custom_call.1} parent=5 // pred_fallthru
        _
      %p841 = scmp.le.s32.totalorder 2, %s33
      // Predicated region
      $region89: #{tpu_custom_call.1} parent=5 // pred_check
        %p842 = pneg %p841
      $region90: #{tpu_custom_call.1} parent=5 // pred_check_branch
        %844 = sbr.rel (%p842) target = $region92
      $region91: #{tpu_custom_call.1} parent=5 // pred_region
        %s845 = ssub.s32 %s33, 2
        // Predicated region
        $region93: #{tpu_custom_call.1} parent=91 // pred_check
          %p846 = pneg %p334
        $region94: #{tpu_custom_call.1} parent=91 // pred_check_branch
          %848 = sbr.rel (%p846) target = $region96
        $region95: #{tpu_custom_call.1} parent=91 // pred_region
          %s849 = sand.u32 %s319, 1
          %s850 = scalar_lea.sflag [#allocation4], %s849
          %s851 = sand.u32 %s319, 1
          %s852 = scalar_lea.vmem [#allocation9], %s851
          %854 = dma.done %s850, 16
        $region96: #{tpu_custom_call.1} parent=91 // pred_fallthru
          _
        // Predicated region
        $region97: #{tpu_custom_call.1} parent=91 // pred_check
          %p855 = pneg %p360
        $region98: #{tpu_custom_call.1} parent=91 // pred_check_branch
          %857 = sbr.rel (%p855) target = $region100
        $region99: #{tpu_custom_call.1} parent=91 // pred_region
          %s858 = sand.u32 %s345, 1
          %s859 = scalar_lea.sflag [#allocation11], %s858
          %s860 = sand.u32 %s345, 1
          %s861 = smul.addr %s860, 8
          %s862 = scalar_lea.vmem [#allocation10], %s861
          %864 = dma.done %s859, 128
        $region100: #{tpu_custom_call.1} parent=91 // pred_fallthru
          _
      $region92: #{tpu_custom_call.1} parent=5 // pred_fallthru
        _
    $region6: #{tpu_custom_call.1} parent=1 // loop_footer
      %s37 = sadd.s32 1, %s33
    $region7: #{tpu_custom_call.1} parent=1 // loop_footer_branch
      %32 = sbr.rel target = $region3
    $region8: #{tpu_custom_call.1} parent=1 // loop_exit
      _
    %865 = vsyncpa [#allocation3], 1
    %s866 = scalar_lea.sflag [#allocation3], 1
    %867 = vsyncpa %s866, 1
    %868 = vsyncpa [#allocation8], 1
    %s869 = scalar_lea.sflag [#allocation8], 1
    %870 = vsyncpa %s869, 1
    %871 = vsyncpa [#allocation4], 1
    %s872 = scalar_lea.sflag [#allocation4], 1
    %873 = vsyncpa %s872, 1
    %874 = vsyncpa [#allocation11], 1
    %s875 = scalar_lea.sflag [#allocation11], 1
    %876 = vsyncpa %s875, 1
    %877 = vsyncpa [#allocation5], 1
    %s878 = scalar_lea.sflag [#allocation5], 1
    %879 = vsyncpa %s878, 1

</llo_original>
